<compile_context>
chip_gen: v5e
topology: v5e:2x2
jax: 0.10.0
libtpu: 0.0.40
codegen_flags: <defaults>
</compile_context>

<pallas_src>
import functools

import numpy as np
import jax
import jax.numpy as jnp
from jax.experimental import pallas as pl
from jax.experimental.pallas import tpu as pltpu


def _round_up(x, m):
    return ((x + m - 1) // m) * m


def _cdiv(a, b):
    return -(-a // b)


# ----------------------------------------------------------------------------
# Kernel
# ----------------------------------------------------------------------------
def critic_kernel(x_ref, w_in_ref, b1_ref, w2a_ref, b2_ref, w3_ref, o_ref,
                  *, h1_cols):
    x = x_ref[...]                                           # (bb, obs+act)

    # Single MXU pass against the block-diag stacked input weights:
    #   t[:, :H1]  = obs  @ W1   (FC1 pre-activation)
    #   t[:, H1:]  = acts @ W2b  (the "acts" half of FC2)
    # Split points are multiples of 128 lanes -> free vreg-boundary slices.
    t = jnp.dot(x, w_in_ref[...], preferred_element_type=jnp.float32)

    # FC1 bias + ReLU in f32 (v5e VPU has no bf16).
    h1 = jnp.maximum(t[:, :h1_cols] + b1_ref[...], 0.0)

    # FC2 over concat([h1, acts], 1) == h1 @ W2a + acts @ W2b (exact split).
    # NOTE: in bf16 streaming mode h1 is re-rounded to bf16 here.
    h2 = jnp.maximum(
        jnp.dot(h1.astype(w2a_ref.dtype), w2a_ref[...],
                preferred_element_type=jnp.float32)
        + t[:, h1_cols:] + b2_ref[...],
        0.0)

    # FC3 (N=1): VPU multiply by the W3 row + cross-lane reduce (XLU).
    # Emit the natural (bb, 1) column; b3 is added in the wrapper.
    o_ref[...] = jnp.sum(h2 * w3_ref[...], axis=-1,
                         keepdims=True).astype(o_ref.dtype)


# ----------------------------------------------------------------------------
# One-time parameter preparation (hoisted out of the per-call path)
# ----------------------------------------------------------------------------
def prepare_params(raw_params, *, compute_dtype=jnp.bfloat16):
    """Pad / cast / stack the Critic weights once.

    raw_params: (w1, b1, w2, b2, w3, b3) with weights in (in, out) layout:
      w1: (obs_dim, h1)   b1: (1, h1)
      w2: (h1 + act_dim, h2)   b2: (1, h2)
      w3: (h2, 1)   b3: (1, 1)
    """
    w1, b1, w2, b2, w3, b3 = raw_params
    obs_dim, h1_dim = w1.shape
    act_dim = w2.shape[0] - h1_dim
    h2_dim = w2.shape[1]

    # Zero-pad hidden widths to full 128-lane vregs (mathematically exact).
    H1 = _round_up(h1_dim, 128)
    H2 = _round_up(h2_dim, 128)
    in_dim = obs_dim + act_dim

    w2a = w2[:h1_dim, :]
    w2b = w2[h1_dim:, :]

    # Block-diagonal stacked input weights: (obs+act, H1+H2).
    w_in = jnp.zeros((in_dim, H1 + H2), jnp.float32)
    w_in = w_in.at[:obs_dim, :h1_dim].set(w1)
    w_in = w_in.at[obs_dim:, H1:H1 + h2_dim].set(w2b)

    w2ap = jnp.pad(w2a, ((0, H1 - h1_dim), (0, H2 - h2_dim)))
    b1p = jnp.pad(b1, ((0, 0), (0, H1 - h1_dim))).astype(jnp.float32)
    b2p = jnp.pad(b2, ((0, 0), (0, H2 - h2_dim))).astype(jnp.float32)
    w3_row = jnp.pad(w3.T, ((0, 0), (0, H2 - h2_dim))).astype(jnp.float32)

    return {
        "w_in": w_in.astype(compute_dtype),
        "w2a": w2ap.astype(compute_dtype),
        "b1": b1p,
        "b2": b2p,
        "w3_row": w3_row,
        "b3": b3.astype(jnp.float32),
        "h1_cols": H1,
        "in_dim": in_dim,
        "obs_dim": obs_dim,
        "act_dim": act_dim,
        "compute_dtype": compute_dtype,
    }


# ----------------------------------------------------------------------------
# Batch-tile selection: big tiles (amortize per-step overhead), but keep
# >= 2 grid steps when possible so v7x's 2 TensorCores both get work.
# ----------------------------------------------------------------------------
def _select_tiling(batch, block_b=None, max_block=1024):
    pb128 = _round_up(max(batch, 1), 128)
    if block_b is None:
        if pb128 <= 128:
            block_b = pb128
        else:
            steps = max(2, _cdiv(pb128, max_block))
            block_b = _round_up(_cdiv(pb128, steps), 128)
    else:
        block_b = _round_up(block_b, 128)
    pb = _round_up(max(batch, 1), block_b)
    return block_b, pb


# ----------------------------------------------------------------------------
# Forward wrapper
# ----------------------------------------------------------------------------
def critic_forward(obs, acts, prepared, *, block_b=None):
    """obs: (B, obs_dim), acts: (B, act_dim) -> (B, 1) float32."""
    p = prepared
    B = obs.shape[0]

    # Per-call work: fuse obs+acts into one streamed input, pad batch, cast.
    x = jnp.concatenate([obs, acts], axis=1)
    block_b, PB = _select_tiling(B, block_b)
    x = jnp.pad(x, ((0, PB - B), (0, 0))).astype(p["compute_dtype"])

    grid = (PB // block_b,)

    # Constant block index -> weights stay VMEM-resident across batch tiles.
    resident = lambda a: pl.BlockSpec(a.shape, lambda i: (0, 0))

    kernel = functools.partial(critic_kernel, h1_cols=p["h1_cols"])

    out = pl.pallas_call(
        kernel,
        out_shape=jax.ShapeDtypeStruct((PB, 1), jnp.float32),
        grid_spec=pltpu.PrefetchScalarGridSpec(
            num_scalar_prefetch=0,
            grid=grid,
            in_specs=[
                pl.BlockSpec((block_b, p["in_dim"]), lambda i: (i, 0)),  # streamed
                resident(p["w_in"]),
                resident(p["b1"]),
                resident(p["w2a"]),
                resident(p["b2"]),
                resident(p["w3_row"]),
            ],
            out_specs=pl.BlockSpec((block_b, 1), lambda i: (i, 0)),
        ),
        compiler_params=pltpu.CompilerParams(
            dimension_semantics=("parallel",)),   # megacore sharding on v7x
    )(x, p["w_in"], p["b1"], p["w2a"], p["b2"], p["w3_row"])

    # Scalar FC3 bias added here (cheaper than a (1,1) VMEM-resident input).
    return out[:B] + p["b3"]


# ----------------------------------------------------------------------------
# Initialization mirroring the PyTorch module (including its fanin quirk:
# fanin_init(size) uses fanin = size[0] = out_features for the weights).
# ----------------------------------------------------------------------------
def fanin_init(key, shape, fanin):
    v = 1.0 / np.sqrt(fanin)
    return jax.random.uniform(key, shape, jnp.float32, minval=-v, maxval=v)


def make_params(key, n_agent, dim_observation, dim_action,
                fc_units_1=64, fc_units_2=64, init_w=0.003):
    obs_dim = dim_observation * n_agent
    act_dim = dim_action * n_agent
    k = jax.random.split(key, 6)

    # PyTorch Linear weight is (out, in); we keep (in, out) so y = x @ W + b.
    w1 = fanin_init(k[0], (obs_dim, fc_units_1), fanin=fc_units_1)
    b1 = jax.random.uniform(k[1], (1, fc_units_1), jnp.float32,
                            minval=-1.0 / np.sqrt(obs_dim),
                            maxval=1.0 / np.sqrt(obs_dim))
    w2 = fanin_init(k[2], (fc_units_1 + act_dim, fc_units_2), fanin=fc_units_2)
    b2 = jax.random.uniform(k[3], (1, fc_units_2), jnp.float32,
                            minval=-1.0 / np.sqrt(fc_units_1 + act_dim),
                            maxval=1.0 / np.sqrt(fc_units_1 + act_dim))
    w3 = jax.random.uniform(k[4], (fc_units_2, 1), jnp.float32,
                            minval=-init_w, maxval=init_w)
    b3 = jax.random.uniform(k[5], (1, 1), jnp.float32,
                            minval=-1.0 / np.sqrt(fc_units_2),
                            maxval=1.0 / np.sqrt(fc_units_2))
    return (w1, b1, w2, b2, w3, b3)


def critic_ref(obs, acts, raw_params):
    """Pure-JAX reference for correctness check."""
    w1, b1, w2, b2, w3, b3 = raw_params
    h1 = jnp.maximum(obs @ w1 + b1, 0.0)
    combined = jnp.concatenate([h1, acts], axis=1)
    h2 = jnp.maximum(combined @ w2 + b2, 0.0)
    return h2 @ w3 + b3


if __name__ == "__main__":
    n_agent = 2
    dim_observation = 8
    dim_action = 4
    batch = 200   # padded to 256 rows -> 2 batch tiles of 128 (exercises grid)

    key = jax.random.PRNGKey(0)
    kp, ko, ka = jax.random.split(key, 3)

    raw_params = make_params(kp, n_agent, dim_observation, dim_action)
    obs = jax.random.normal(ko, (batch, dim_observation * n_agent), jnp.float32)
    acts = jax.random.normal(ka, (batch, dim_action * n_agent), jnp.float32)

    ref = critic_ref(obs, acts, raw_params)

    # f32 streaming path (exact up to accumulation order).
    prep_f32 = prepare_params(raw_params, compute_dtype=jnp.float32)
    out_f32 = jax.block_until_ready(critic_forward(obs, acts, prep_f32))
    np.testing.assert_allclose(np.asarray(out_f32), np.asarray(ref),
                               rtol=1e-5, atol=1e-5)
    assert out_f32.shape == (batch, 1)

    # Default bf16 streaming path (halves input HBM bytes; f32 accumulation;
    # h1 is re-rounded to bf16 before FC2 in this mode).
    prep_bf16 = prepare_params(raw_params)
    out_bf16 = jax.block_until_ready(critic_forward(obs, acts, prep_bf16))
    np.testing.assert_allclose(np.asarray(out_bf16), np.asarray(ref),
                               rtol=5e-2, atol=5e-2)
    assert out_bf16.shape == (batch, 1)

    print("KERNEL_OK")
</pallas_src>

<mosaic_0001>
module attributes {stable_mosaic.version = 11 : i64} {
  func.func @critic_kernel(%arg0: i32, %arg1: memref<128x24xf32, #tpu.memory_space<vmem>>, %arg2: memref<24x256xf32, #tpu.memory_space<vmem>>, %arg3: memref<1x128xf32, #tpu.memory_space<vmem>>, %arg4: memref<128x128xf32, #tpu.memory_space<vmem>>, %arg5: memref<1x128xf32, #tpu.memory_space<vmem>>, %arg6: memref<1x128xf32, #tpu.memory_space<vmem>>, %arg7: memref<128x1xf32, #tpu.memory_space<vmem>>) attributes {dimension_semantics = [#tpu.dimension_semantics<parallel>], iteration_bounds = array<i64: 2>, scalar_prefetch = 0 : i64, scratch_operands = 0 : i64, tpu.core_type = #tpu.core_type<tc>, window_params = [{transform_indices = @transform_0, window_bounds = array<i64: 128, 24>}, {pipeline_mode = #tpu.pipeline_mode<synchronous>, transform_indices = @transform_1, window_bounds = array<i64: 24, 256>}, {pipeline_mode = #tpu.pipeline_mode<synchronous>, transform_indices = @transform_2, window_bounds = array<i64: 1, 128>}, {pipeline_mode = #tpu.pipeline_mode<synchronous>, transform_indices = @transform_3, window_bounds = array<i64: 128, 128>}, {pipeline_mode = #tpu.pipeline_mode<synchronous>, transform_indices = @transform_4, window_bounds = array<i64: 1, 128>}, {pipeline_mode = #tpu.pipeline_mode<synchronous>, transform_indices = @transform_5, window_bounds = array<i64: 1, 128>}, {transform_indices = @transform_6, window_bounds = array<i64: 128, 1>}]} {
    %c0 = arith.constant 0 : index
    %c0_0 = arith.constant 0 : index
    %0 = vector.load %arg1[%c0, %c0_0] : memref<128x24xf32, #tpu.memory_space<vmem>>, vector<128x24xf32>
    %c0_1 = arith.constant 0 : index
    %c0_2 = arith.constant 0 : index
    %1 = vector.load %arg2[%c0_1, %c0_2] : memref<24x256xf32, #tpu.memory_space<vmem>>, vector<24x256xf32>
    %cst = arith.constant dense<0.000000e+00> : vector<128x256xf32>
    %2 = tpu.matmul %0, %1, %cst {dimension_numbers = #tpu.dot_dimension_numbers<[1], [0], [0], [1], [0, 0, 1, 1], [], []>} : vector<128x24xf32>, vector<24x256xf32>, vector<128x256xf32> -> vector<128x256xf32>
    %3 = vector.extract_strided_slice %2 {offsets = [0, 0], sizes = [128, 128], strides = [1, 1]} : vector<128x256xf32> to vector<128x128xf32>
    %c0_3 = arith.constant 0 : index
    %c0_4 = arith.constant 0 : index
    %4 = vector.load %arg3[%c0_3, %c0_4] : memref<1x128xf32, #tpu.memory_space<vmem>>, vector<1x128xf32>
    %5 = vector.broadcast %4 : vector<1x128xf32> to vector<128x128xf32>
    %6 = arith.addf %3, %5 : vector<128x128xf32>
    %cst_5 = arith.constant 0.000000e+00 : f32
    %7 = vector.broadcast %cst_5 : f32 to vector<128x128xf32>
    %8 = arith.maximumf %6, %7 : vector<128x128xf32>
    %c0_6 = arith.constant 0 : index
    %c0_7 = arith.constant 0 : index
    %9 = vector.load %arg4[%c0_6, %c0_7] : memref<128x128xf32, #tpu.memory_space<vmem>>, vector<128x128xf32>
    %cst_8 = arith.constant dense<0.000000e+00> : vector<128x128xf32>
    %10 = tpu.matmul %8, %9, %cst_8 {dimension_numbers = #tpu.dot_dimension_numbers<[1], [0], [0], [1], [0, 0, 1, 1], [], []>} : vector<128x128xf32>, vector<128x128xf32>, vector<128x128xf32> -> vector<128x128xf32>
    %11 = vector.extract_strided_slice %2 {offsets = [0, 128], sizes = [128, 128], strides = [1, 1]} : vector<128x256xf32> to vector<128x128xf32>
    %12 = arith.addf %10, %11 : vector<128x128xf32>
    %c0_9 = arith.constant 0 : index
    %c0_10 = arith.constant 0 : index
    %13 = vector.load %arg5[%c0_9, %c0_10] : memref<1x128xf32, #tpu.memory_space<vmem>>, vector<1x128xf32>
    %14 = vector.broadcast %13 : vector<1x128xf32> to vector<128x128xf32>
    %15 = arith.addf %12, %14 : vector<128x128xf32>
    %cst_11 = arith.constant 0.000000e+00 : f32
    %16 = vector.broadcast %cst_11 : f32 to vector<128x128xf32>
    %17 = arith.maximumf %15, %16 : vector<128x128xf32>
    %c0_12 = arith.constant 0 : index
    %c0_13 = arith.constant 0 : index
    %18 = vector.load %arg6[%c0_12, %c0_13] : memref<1x128xf32, #tpu.memory_space<vmem>>, vector<1x128xf32>
    %19 = vector.broadcast %18 : vector<1x128xf32> to vector<128x128xf32>
    %20 = arith.mulf %17, %19 : vector<128x128xf32>
    %cst_14 = arith.constant dense<0.000000e+00> : vector<128xf32>
    %21 = vector.multi_reduction <add>, %20, %cst_14 [1] : vector<128x128xf32> to vector<128xf32>
    %22 = vector.shape_cast %21 : vector<128xf32> to vector<128x1xf32>
    %c0_15 = arith.constant 0 : index
    %c0_16 = arith.constant 0 : index
    %23 = vector.load %arg7[%c0_15, %c0_16] : memref<128x1xf32, #tpu.memory_space<vmem>>, vector<128x1xf32>
    tpu.vector_store %arg7[%c0_15, %c0_16], %22 {strides = array<i32>} : memref<128x1xf32, #tpu.memory_space<vmem>>, vector<128x1xf32>,
    return
  }
  func.func @transform_0(%arg0: i32) -> (i32, i32) {
    %c0_i32 = arith.constant 0 : i32
    %c0_i32_0 = arith.constant 0 : i32
    return %arg0, %c0_i32 : i32, i32
  }
  func.func @transform_1(%arg0: i32) -> (i32, i32) {
    %c0_i32 = arith.constant 0 : i32
    %c0_i32_0 = arith.constant 0 : i32
    %c0_i32_1 = arith.constant 0 : i32
    return %c0_i32, %c0_i32_0 : i32, i32
  }
  func.func @transform_2(%arg0: i32) -> (i32, i32) {
    %c0_i32 = arith.constant 0 : i32
    %c0_i32_0 = arith.constant 0 : i32
    %c0_i32_1 = arith.constant 0 : i32
    return %c0_i32, %c0_i32_0 : i32, i32
  }
  func.func @transform_3(%arg0: i32) -> (i32, i32) {
    %c0_i32 = arith.constant 0 : i32
    %c0_i32_0 = arith.constant 0 : i32
    %c0_i32_1 = arith.constant 0 : i32
    return %c0_i32, %c0_i32_0 : i32, i32
  }
  func.func @transform_4(%arg0: i32) -> (i32, i32) {
    %c0_i32 = arith.constant 0 : i32
    %c0_i32_0 = arith.constant 0 : i32
    %c0_i32_1 = arith.constant 0 : i32
    return %c0_i32, %c0_i32_0 : i32, i32
  }
  func.func @transform_5(%arg0: i32) -> (i32, i32) {
    %c0_i32 = arith.constant 0 : i32
    %c0_i32_0 = arith.constant 0 : i32
    %c0_i32_1 = arith.constant 0 : i32
    return %c0_i32, %c0_i32_0 : i32, i32
  }
  func.func @transform_6(%arg0: i32) -> (i32, i32) {
    %c0_i32 = arith.constant 0 : i32
    %c0_i32_0 = arith.constant 0 : i32
    return %arg0, %c0_i32 : i32, i32
  }
}

</mosaic_0001>

<llo_original>
// kernel: tpu_custom_call.1
$region0: #{tpu_custom_call.1}
  #allocation0 [shape = 'u32[]', space=smem, size = 0x4, offset = 0x4, fixed_abs, tag = 'smem constant byte address 0x4 - core index']
  #allocation1 [shape = 'u32[72,128]{1,0:T(1,128)}', space=vmem, size = 0x9000, scoped, tag = 'internal scratch']
  %s0 = inlined_call_operand.vmem [shape: f32[256,24], index: 0, kind: input, shape index: {}]
  %s1 = inlined_call_operand.vmem [shape: f32[24,256], index: 1, kind: input, shape index: {}]
  %s2 = inlined_call_operand.vmem [shape: f32[1,128], index: 2, kind: input, shape index: {}]
  %s3 = inlined_call_operand.vmem [shape: f32[128,128], index: 3, kind: input, shape index: {}]
  %s4 = inlined_call_operand.vmem [shape: f32[1,128], index: 4, kind: input, shape index: {}]
  %s5 = inlined_call_operand.vmem [shape: f32[1,128], index: 5, kind: input, shape index: {}]
  %s6 = inlined_call_operand.vmem [shape: f32[256,1], index: 6, kind: output, shape index: {}]
  %s7 = sld [smem:[#allocation0]]
  $region57: #{tpu_custom_call.1} parent=0
    _
  %s9 = ssub.s32 1, %s7
  %s10 = scalar_select 0, %s9, %s7
  loop: start=0, step=1, limit=4
  $region2: #{tpu_custom_call.1} parent=0 // loop_pre_header
    _
  $region3: #{tpu_custom_call.1} parent=0 // loop_header
    %s12 = sphi 0, %s16
    %p13 = scmp.ge.s32.totalorder %s12, 4
    %s22 = sphi 0, %s24
    %s25 = sphi 0, %s22
    %s26 = sphi 0, %s25
    %s42 = sphi 0, %s26
    %s46 = sphi 0, %s46
    %s48 = sphi 0, %s46
    %s49 = sphi 0, %s48
    %s63 = sphi 0, %s49
    %s67 = sphi 0, %s67
    %s69 = sphi 0, %s67
    %s70 = sphi 0, %s69
    %s84 = sphi 0, %s70
    %s88 = sphi 0, %s88
    %s90 = sphi 0, %s88
    %s91 = sphi 0, %s90
    %s105 = sphi 0, %s91
    %s109 = sphi 0, %s109
    %s111 = sphi 0, %s109
    %s112 = sphi 0, %s111
    %s126 = sphi 0, %s112
    %s130 = sphi 0, %s130
    %s132 = sphi 0, %s130
    %s133 = sphi 0, %s132
    %s147 = sphi 0, %s133
    %s153 = sphi 0, %s155
    %s156 = sphi 0, %s153
    %s157 = sphi 0, %s156
    %s173 = sphi 0, %s157
  $region4: #{tpu_custom_call.1} parent=0 // loop_header_branch
    %15 = sbr.rel (%p13) target = $region8
  $region5: #{tpu_custom_call.1} parent=0 // loop_body
    %s17 = ssub.s32 %s12, 1
    %s18 = ssub.s32 %s12, 2
    %s19 = sadd.s32 %s12, 1
    %s20 = ssub.s32 %s12, %s19
    %p21 = scmp.eq.s32.totalorder %s20, 0
    %s23 = sadd.s32 %s22, 1
    %s24 = scalar_select %p21, %s22, %s23
    %p27 = pneg %p21
    %p28 = scmp.eq.s32.totalorder %s12, 1
    %p29 = por %p27, %p28
    %p30 = scmp.ne.s32.totalorder %s22, %s25
    %p31 = scmp.eq.s32.totalorder %s12, 0
    %p32 = por %p30, %p31
    %p33 = scmp.ne.s32.totalorder %s22, %s25
    %p34 = scmp.eq.s32.totalorder %s17, 1
    %p35 = por %p33, %p34
    %p36 = scmp.ne.s32.totalorder %s25, %s26
    %p37 = scmp.eq.s32.totalorder %s17, 0
    %p38 = por %p36, %p37
    %p39 = scmp.ne.s32.totalorder %s25, %s26
    %p40 = scmp.eq.s32.totalorder %s18, 1
    %p41 = por %p39, %p40
    %p43 = scmp.ne.s32.totalorder %s26, %s42
    %p44 = scmp.eq.s32.totalorder %s18, 0
    %p45 = por %p43, %p44
    %s47 = sadd.s32 %s46, 1
    %p50 = scmp.eq.s32.totalorder %s12, 1
    %p51 = scmp.ne.s32.totalorder %s46, %s48
    %p52 = scmp.eq.s32.totalorder %s12, 0
    %p53 = por %p51, %p52
    %p54 = scmp.ne.s32.totalorder %s46, %s48
    %p55 = scmp.eq.s32.totalorder %s17, 1
    %p56 = por %p54, %p55
    %p57 = scmp.ne.s32.totalorder %s48, %s49
    %p58 = scmp.eq.s32.totalorder %s17, 0
    %p59 = por %p57, %p58
    %p60 = scmp.ne.s32.totalorder %s48, %s49
    %p61 = scmp.eq.s32.totalorder %s18, 1
    %p62 = por %p60, %p61
    %p64 = scmp.ne.s32.totalorder %s49, %s63
    %p65 = scmp.eq.s32.totalorder %s18, 0
    %p66 = por %p64, %p65
    %s68 = sadd.s32 %s67, 1
    %p71 = scmp.eq.s32.totalorder %s12, 1
    %p72 = scmp.ne.s32.totalorder %s67, %s69
    %p73 = scmp.eq.s32.totalorder %s12, 0
    %p74 = por %p72, %p73
    %p75 = scmp.ne.s32.totalorder %s67, %s69
    %p76 = scmp.eq.s32.totalorder %s17, 1
    %p77 = por %p75, %p76
    %p78 = scmp.ne.s32.totalorder %s69, %s70
    %p79 = scmp.eq.s32.totalorder %s17, 0
    %p80 = por %p78, %p79
    %p81 = scmp.ne.s32.totalorder %s69, %s70
    %p82 = scmp.eq.s32.totalorder %s18, 1
    %p83 = por %p81, %p82
    %p85 = scmp.ne.s32.totalorder %s70, %s84
    %p86 = scmp.eq.s32.totalorder %s18, 0
    %p87 = por %p85, %p86
    %s89 = sadd.s32 %s88, 1
    %p92 = scmp.eq.s32.totalorder %s12, 1
    %p93 = scmp.ne.s32.totalorder %s88, %s90
    %p94 = scmp.eq.s32.totalorder %s12, 0
    %p95 = por %p93, %p94
    %p96 = scmp.ne.s32.totalorder %s88, %s90
    %p97 = scmp.eq.s32.totalorder %s17, 1
    %p98 = por %p96, %p97
    %p99 = scmp.ne.s32.totalorder %s90, %s91
    %p100 = scmp.eq.s32.totalorder %s17, 0
    %p101 = por %p99, %p100
    %p102 = scmp.ne.s32.totalorder %s90, %s91
    %p103 = scmp.eq.s32.totalorder %s18, 1
    %p104 = por %p102, %p103
    %p106 = scmp.ne.s32.totalorder %s91, %s105
    %p107 = scmp.eq.s32.totalorder %s18, 0
    %p108 = por %p106, %p107
    %s110 = sadd.s32 %s109, 1
    %p113 = scmp.eq.s32.totalorder %s12, 1
    %p114 = scmp.ne.s32.totalorder %s109, %s111
    %p115 = scmp.eq.s32.totalorder %s12, 0
    %p116 = por %p114, %p115
    %p117 = scmp.ne.s32.totalorder %s109, %s111
    %p118 = scmp.eq.s32.totalorder %s17, 1
    %p119 = por %p117, %p118
    %p120 = scmp.ne.s32.totalorder %s111, %s112
    %p121 = scmp.eq.s32.totalorder %s17, 0
    %p122 = por %p120, %p121
    %p123 = scmp.ne.s32.totalorder %s111, %s112
    %p124 = scmp.eq.s32.totalorder %s18, 1
    %p125 = por %p123, %p124
    %p127 = scmp.ne.s32.totalorder %s112, %s126
    %p128 = scmp.eq.s32.totalorder %s18, 0
    %p129 = por %p127, %p128
    %s131 = sadd.s32 %s130, 1
    %p134 = scmp.eq.s32.totalorder %s12, 1
    %p135 = scmp.ne.s32.totalorder %s130, %s132
    %p136 = scmp.eq.s32.totalorder %s12, 0
    %p137 = por %p135, %p136
    %p138 = scmp.ne.s32.totalorder %s130, %s132
    %p139 = scmp.eq.s32.totalorder %s17, 1
    %p140 = por %p138, %p139
    %p141 = scmp.ne.s32.totalorder %s132, %s133
    %p142 = scmp.eq.s32.totalorder %s17, 0
    %p143 = por %p141, %p142
    %p144 = scmp.ne.s32.totalorder %s132, %s133
    %p145 = scmp.eq.s32.totalorder %s18, 1
    %p146 = por %p144, %p145
    %p148 = scmp.ne.s32.totalorder %s133, %s147
    %p149 = scmp.eq.s32.totalorder %s18, 0
    %p150 = por %p148, %p149
    %s151 = ssub.s32 %s12, %s19
    %p152 = scmp.eq.s32.totalorder %s151, 0
    %s154 = sadd.s32 %s153, 1
    %s155 = scalar_select %p152, %s153, %s154
    %p158 = pneg %p152
    %p159 = scmp.eq.s32.totalorder %s12, 1
    %p160 = por %p158, %p159
    %p161 = scmp.ne.s32.totalorder %s153, %s156
    %p162 = scmp.eq.s32.totalorder %s12, 0
    %p163 = por %p161, %p162
    %p164 = scmp.ne.s32.totalorder %s153, %s156
    %p165 = scmp.eq.s32.totalorder %s17, 1
    %p166 = por %p164, %p165
    %p167 = scmp.ne.s32.totalorder %s156, %s157
    %p168 = scmp.eq.s32.totalorder %s17, 0
    %p169 = por %p167, %p168
    %p170 = scmp.ne.s32.totalorder %s156, %s157
    %p171 = scmp.eq.s32.totalorder %s18, 1
    %p172 = por %p170, %p171
    %p174 = scmp.ne.s32.totalorder %s157, %s173
    %p175 = scmp.eq.s32.totalorder %s18, 0
    %p176 = por %p174, %p175
    %p177 = scmp.le.s32.totalorder 1, %s12
    %p178 = scmp.lt.s32.totalorder %s12, 3
    %p179 = pnand %p177, %p178
    %p180 = pneg %p179
    // Predicated region
    $region9: #{tpu_custom_call.1} parent=5 // pred_check
      _
    $region10: #{tpu_custom_call.1} parent=5 // pred_check_branch
      %182 = sbr.rel (%p179) target = $region12
    $region11: #{tpu_custom_call.1} parent=5 // pred_region
      %s183 = ssub.s32 %s12, 1
      // Predicated region
      $region13: #{tpu_custom_call.1} parent=11 // pred_check
        %p184 = pneg %p59
      $region14: #{tpu_custom_call.1} parent=11 // pred_check_branch
        %186 = sbr.rel (%p184) target = $region16
      $region15: #{tpu_custom_call.1} parent=11 // pred_region
        _
      $region16: #{tpu_custom_call.1} parent=11 // pred_fallthru
        _
      // Predicated region
      $region17: #{tpu_custom_call.1} parent=11 // pred_check
        %p187 = pneg %p80
      $region18: #{tpu_custom_call.1} parent=11 // pred_check_branch
        %189 = sbr.rel (%p187) target = $region20
      $region19: #{tpu_custom_call.1} parent=11 // pred_region
        _
      $region20: #{tpu_custom_call.1} parent=11 // pred_fallthru
        _
      // Predicated region
      $region21: #{tpu_custom_call.1} parent=11 // pred_check
        %p190 = pneg %p101
      $region22: #{tpu_custom_call.1} parent=11 // pred_check_branch
        %192 = sbr.rel (%p190) target = $region24
      $region23: #{tpu_custom_call.1} parent=11 // pred_region
        _
      $region24: #{tpu_custom_call.1} parent=11 // pred_fallthru
        _
      // Predicated region
      $region25: #{tpu_custom_call.1} parent=11 // pred_check
        %p193 = pneg %p122
      $region26: #{tpu_custom_call.1} parent=11 // pred_check_branch
        %195 = sbr.rel (%p193) target = $region28
      $region27: #{tpu_custom_call.1} parent=11 // pred_region
        _
      $region28: #{tpu_custom_call.1} parent=11 // pred_fallthru
        _
      // Predicated region
      $region29: #{tpu_custom_call.1} parent=11 // pred_check
        %p196 = pneg %p143
      $region30: #{tpu_custom_call.1} parent=11 // pred_check_branch
        %198 = sbr.rel (%p196) target = $region32
      $region31: #{tpu_custom_call.1} parent=11 // pred_region
        _
      $region32: #{tpu_custom_call.1} parent=11 // pred_fallthru
        _
    $region12: #{tpu_custom_call.1} parent=5 // pred_fallthru
      _
    %p199 = scmp.lt.s32.totalorder %s12, 2
    // Predicated region
    $region33: #{tpu_custom_call.1} parent=5 // pred_check
      %p200 = pneg %p199
    $region34: #{tpu_custom_call.1} parent=5 // pred_check_branch
      %202 = sbr.rel (%p200) target = $region36
    $region35: #{tpu_custom_call.1} parent=5 // pred_region
      // Predicated region
      $region37: #{tpu_custom_call.1} parent=35 // pred_check
        %p203 = pneg %p32
      $region38: #{tpu_custom_call.1} parent=35 // pred_check_branch
        %205 = sbr.rel (%p203) target = $region40
      $region39: #{tpu_custom_call.1} parent=35 // pred_region
        %s206 = smul.u32 16, %s12
        %p207 = scmp.lt.s32.totalorder %s206, 31
        %s208 = scalar_select %p207, %s206, 31
        %s209 = smul.addr %s208, 8
        %s210 = scalar_lea.vmem %s0, %s209
        %s211 = smul.u32 16, %s12
      $region40: #{tpu_custom_call.1} parent=35 // pred_fallthru
        _
    $region36: #{tpu_custom_call.1} parent=5 // pred_fallthru
      _
    %p212 = scmp.le.s32.totalorder 1, %s12
    %p213 = scmp.lt.s32.totalorder %s12, 3
    %p214 = pnand %p212, %p213
    %p215 = pneg %p214
    // Predicated region
    $region41: #{tpu_custom_call.1} parent=5 // pred_check
      _
    $region42: #{tpu_custom_call.1} parent=5 // pred_check_branch
      %217 = sbr.rel (%p214) target = $region44
    $region43: #{tpu_custom_call.1} parent=5 // pred_region
      %s218 = ssub.s32 %s12, 1
      %s219 = smul.u32 16, %s17
      %p220 = scmp.lt.s32.totalorder %s219, 31
      %s221 = scalar_select %p220, %s219, 31
      %s222 = smul.addr %s221, 8
      %s223 = scalar_lea.vmem %s0, %s222
      %p224 = pneg %p38
      %p225 = pneg %p35
      %p226 = pneg %p59
      %p227 = pneg %p56
      %p228 = pneg %p80
      %p229 = pneg %p77
      %p230 = pneg %p101
      %p231 = pneg %p98
      %p232 = pneg %p122
      %p233 = pneg %p119
      %p234 = pneg %p143
      %p235 = pneg %p140
      %p236 = pneg %p169
      %p237 = pneg %p166
      %s238 = smul.u32 16, %s17
      %p239 = scmp.lt.s32.totalorder %s238, 31
      %s240 = scalar_select %p239, %s238, 31
      %s241 = smul.addr %s240, 8
      %s242 = scalar_lea.vmem %s6, %s241
      %s243 = smul.u32 16, %s17
      %p244 = scmp.lt.s32.totalorder %s243, 31
      %s245 = scalar_select %p244, %s243, 31
      %s246 = smul.addr %s245, 8
      %s247 = scalar_lea.vmem %s0, %s246
      %s248 = smul.u32 16, %s17
      %s249 = smul.u32 16, %s17
      %p250 = scmp.lt.s32.totalorder %s249, 31
      %s251 = scalar_select %p250, %s249, 31
      %s252 = smul.addr %s251, 8
      %s253 = scalar_lea.vmem %s6, %s252
      %s254 = smul.u32 16, %s17
      %v255 = vld [vmem:[%s247] sm:$0xff]
      %v256 = vld [vmem:[%s247 + $0x8] sm:$0xff]
      %v257 = vld [vmem:[%s247 + $0x10] sm:$0xff]
      %v258 = vld [vmem:[%s247 + $0x18] sm:$0xff]
      %v259 = vld [vmem:[%s247 + $0x20] sm:$0xff]
      %v260 = vld [vmem:[%s247 + $0x28] sm:$0xff]
      %v261 = vld [vmem:[%s247 + $0x30] sm:$0xff]
      %v262 = vld [vmem:[%s247 + $0x38] sm:$0xff]
      %v263 = vld [vmem:[%s247 + $0x40] sm:$0xff]
      %v264 = vld [vmem:[%s247 + $0x48] sm:$0xff]
      %v265 = vld [vmem:[%s247 + $0x50] sm:$0xff]
      %v266 = vld [vmem:[%s247 + $0x58] sm:$0xff]
      %v267 = vld [vmem:[%s247 + $0x60] sm:$0xff]
      %v268 = vld [vmem:[%s247 + $0x68] sm:$0xff]
      %v269 = vld [vmem:[%s247 + $0x70] sm:$0xff]
      %v270 = vld [vmem:[%s247 + $0x78] sm:$0xff]
      %v271 = vld [vmem:[%s1] sm:$0xff]
      %v272 = vld [vmem:[%s1 + $0x8] sm:$0xff]
      %v273 = vld [vmem:[%s1 + $0x10] sm:$0xff]
      %v274 = vld [vmem:[%s1 + $0x18] sm:$0xff]
      %v275 = vld [vmem:[%s1 + $0x20] sm:$0xff]
      %v276 = vld [vmem:[%s1 + $0x28] sm:$0xff]
      %vm277 = vcmask 195584
      %v279 = vsel %vm277, %v255, 0
      %v282 = vsel %vm277, %v256, 0
      %v285 = vsel %vm277, %v257, 0
      %v288 = vsel %vm277, %v258, 0
      %v291 = vsel %vm277, %v259, 0
      %v294 = vsel %vm277, %v260, 0
      %v297 = vsel %vm277, %v261, 0
      %v300 = vsel %vm277, %v262, 0
      %v303 = vsel %vm277, %v263, 0
      %v306 = vsel %vm277, %v264, 0
      %v309 = vsel %vm277, %v265, 0
      %v312 = vsel %vm277, %v266, 0
      %v315 = vsel %vm277, %v267, 0
      %v318 = vsel %vm277, %v268, 0
      %v321 = vsel %vm277, %v269, 0
      %v324 = vsel %vm277, %v270, 0
      %326 = vmatpush.msra.mxu0 0.0
      %327 = vmatpush.msra.mxu0 0.0
      %328 = vmatpush.msra.mxu0 0.0
      %329 = vmatpush.msra.mxu0 0.0
      %330 = vmatpush.msra.mxu0 0.0
      %331 = vmatpush.msra.mxu0 0.0
      %332 = vmatpush.msra.mxu0 0.0
      %333 = vmatpush.msra.mxu0 0.0
      %334 = vmatpush.msra.mxu0 0.0
      %335 = vmatpush.msra.mxu0 0.0
      %336 = vmatpush.msra.mxu0 0.0
      %337 = vmatpush.msra.mxu0 0.0
      %338 = vmatpush.msra.mxu0 0.0
      %339 = vmatpush.msra.mxu0 %v275
      %340 = vmatpush.msra.mxu0 %v273
      %341 = vmatpush.msra.mxu0 %v271
      %342 = vmatmul.f32.gmra.mxu0 %v279
      %v343 = vpop.f32.mrf.mxu0
      %v344 = vadd.f32 0.0, %v343
      %345 = vmatmul.f32.gmra.mxu0 %v282
      %v346 = vpop.f32.mrf.mxu0
      %v347 = vadd.f32 0.0, %v346
      %348 = vmatmul.f32.gmra.mxu0 %v285
      %v349 = vpop.f32.mrf.mxu0
      %v350 = vadd.f32 0.0, %v349
      %351 = vmatmul.f32.gmra.mxu0 %v288
      %v352 = vpop.f32.mrf.mxu0
      %v353 = vadd.f32 0.0, %v352
      %354 = vmatmul.f32.gmra.mxu0 %v291
      %v355 = vpop.f32.mrf.mxu0
      %v356 = vadd.f32 0.0, %v355
      %357 = vmatmul.f32.gmra.mxu0 %v294
      %v358 = vpop.f32.mrf.mxu0
      %v359 = vadd.f32 0.0, %v358
      %360 = vmatmul.f32.gmra.mxu0 %v297
      %v361 = vpop.f32.mrf.mxu0
      %v362 = vadd.f32 0.0, %v361
      %363 = vmatmul.f32.gmra.mxu0 %v300
      %v364 = vpop.f32.mrf.mxu0
      %v365 = vadd.f32 0.0, %v364
      %366 = vmatmul.f32.gmra.mxu0 %v303
      %v367 = vpop.f32.mrf.mxu0
      %v368 = vadd.f32 0.0, %v367
      %369 = vmatmul.f32.gmra.mxu0 %v306
      %v370 = vpop.f32.mrf.mxu0
      %v371 = vadd.f32 0.0, %v370
      %372 = vmatmul.f32.gmra.mxu0 %v309
      %v373 = vpop.f32.mrf.mxu0
      %v374 = vadd.f32 0.0, %v373
      %375 = vmatmul.f32.gmra.mxu0 %v312
      %v376 = vpop.f32.mrf.mxu0
      %v377 = vadd.f32 0.0, %v376
      %378 = vmatmul.f32.gmra.mxu0 %v315
      %v379 = vpop.f32.mrf.mxu0
      %v380 = vadd.f32 0.0, %v379
      %381 = vmatmul.f32.gmra.mxu0 %v318
      %v382 = vpop.f32.mrf.mxu0
      %v383 = vadd.f32 0.0, %v382
      %384 = vmatmul.f32.gmra.mxu0 %v321
      %v385 = vpop.f32.mrf.mxu0
      %v386 = vadd.f32 0.0, %v385
      %387 = vmatmul.f32.gmra.mxu0 %v324
      %v388 = vpop.f32.mrf.mxu0
      %v389 = vadd.f32 0.0, %v388
      %390 = vdwg.mxu0
      %391 = vmatpush.msra.mxu0 0.0
      %392 = vmatpush.msra.mxu0 0.0
      %393 = vmatpush.msra.mxu0 0.0
      %394 = vmatpush.msra.mxu0 0.0
      %395 = vmatpush.msra.mxu0 0.0
      %396 = vmatpush.msra.mxu0 0.0
      %397 = vmatpush.msra.mxu0 0.0
      %398 = vmatpush.msra.mxu0 0.0
      %399 = vmatpush.msra.mxu0 0.0
      %400 = vmatpush.msra.mxu0 0.0
      %401 = vmatpush.msra.mxu0 0.0
      %402 = vmatpush.msra.mxu0 0.0
      %403 = vmatpush.msra.mxu0 0.0
      %404 = vmatpush.msra.mxu0 %v276
      %405 = vmatpush.msra.mxu0 %v274
      %406 = vmatpush.msra.mxu0 %v272
      %407 = vmatmul.f32.gmra.mxu0 %v279
      %v408 = vpop.f32.mrf.mxu0
      %v409 = vadd.f32 0.0, %v408
      %410 = vmatmul.f32.gmra.mxu0 %v282
      %v411 = vpop.f32.mrf.mxu0
      %v412 = vadd.f32 0.0, %v411
      %413 = vmatmul.f32.gmra.mxu0 %v285
      %v414 = vpop.f32.mrf.mxu0
      %v415 = vadd.f32 0.0, %v414
      %416 = vmatmul.f32.gmra.mxu0 %v288
      %v417 = vpop.f32.mrf.mxu0
      %v418 = vadd.f32 0.0, %v417
      %419 = vmatmul.f32.gmra.mxu0 %v291
      %v420 = vpop.f32.mrf.mxu0
      %v421 = vadd.f32 0.0, %v420
      %422 = vmatmul.f32.gmra.mxu0 %v294
      %v423 = vpop.f32.mrf.mxu0
      %v424 = vadd.f32 0.0, %v423
      %425 = vmatmul.f32.gmra.mxu0 %v297
      %v426 = vpop.f32.mrf.mxu0
      %v427 = vadd.f32 0.0, %v426
      %428 = vmatmul.f32.gmra.mxu0 %v300
      %v429 = vpop.f32.mrf.mxu0
      %v430 = vadd.f32 0.0, %v429
      %431 = vmatmul.f32.gmra.mxu0 %v303
      %v432 = vpop.f32.mrf.mxu0
      %v433 = vadd.f32 0.0, %v432
      %434 = vmatmul.f32.gmra.mxu0 %v306
      %v435 = vpop.f32.mrf.mxu0
      %v436 = vadd.f32 0.0, %v435
      %437 = vmatmul.f32.gmra.mxu0 %v309
      %v438 = vpop.f32.mrf.mxu0
      %v439 = vadd.f32 0.0, %v438
      %440 = vmatmul.f32.gmra.mxu0 %v312
      %v441 = vpop.f32.mrf.mxu0
      %v442 = vadd.f32 0.0, %v441
      %443 = vmatmul.f32.gmra.mxu0 %v315
      %v444 = vpop.f32.mrf.mxu0
      %v445 = vadd.f32 0.0, %v444
      %446 = vmatmul.f32.gmra.mxu0 %v318
      %v447 = vpop.f32.mrf.mxu0
      %v448 = vadd.f32 0.0, %v447
      %449 = vmatmul.f32.gmra.mxu0 %v321
      %v450 = vpop.f32.mrf.mxu0
      %v451 = vadd.f32 0.0, %v450
      %452 = vmatmul.f32.gmra.mxu0 %v324
      %v453 = vpop.f32.mrf.mxu0
      %v454 = vadd.f32 0.0, %v453
      %455 = vdwg.mxu0
      %v456 = vld [vmem:[%s2] sm:$0x1]
      %v458 = vperm.slane %v456, 0
      %v460 = vadd.f32 %v344, %v458
      %v461 = vadd.f32 %v347, %v458
      %v462 = vadd.f32 %v350, %v458
      %v463 = vadd.f32 %v353, %v458
      %v464 = vadd.f32 %v356, %v458
      %v465 = vadd.f32 %v359, %v458
      %v466 = vadd.f32 %v362, %v458
      %v467 = vadd.f32 %v365, %v458
      %v468 = vadd.f32 %v368, %v458
      %v469 = vadd.f32 %v371, %v458
      %v470 = vadd.f32 %v374, %v458
      %v471 = vadd.f32 %v377, %v458
      %v472 = vadd.f32 %v380, %v458
      %v473 = vadd.f32 %v383, %v458
      %v474 = vadd.f32 %v386, %v458
      %v475 = vadd.f32 %v389, %v458
      %v476 = vmax.f32 %v460, 0.0
      %v477 = vmax.f32 %v461, 0.0
      %v478 = vmax.f32 %v462, 0.0
      %v479 = vmax.f32 %v463, 0.0
      %v480 = vmax.f32 %v464, 0.0
      %v481 = vmax.f32 %v465, 0.0
      %v482 = vmax.f32 %v466, 0.0
      %v483 = vmax.f32 %v467, 0.0
      %v484 = vmax.f32 %v468, 0.0
      %v485 = vmax.f32 %v469, 0.0
      %v486 = vmax.f32 %v470, 0.0
      %v487 = vmax.f32 %v471, 0.0
      %v488 = vmax.f32 %v472, 0.0
      %v489 = vmax.f32 %v473, 0.0
      %v490 = vmax.f32 %v474, 0.0
      %v491 = vmax.f32 %v475, 0.0
      %v492 = vld [vmem:[%s3] sm:$0xff]
      %v493 = vld [vmem:[%s3 + $0x8] sm:$0xff]
      %v494 = vld [vmem:[%s3 + $0x10] sm:$0xff]
      %v495 = vld [vmem:[%s3 + $0x18] sm:$0xff]
      %v496 = vld [vmem:[%s3 + $0x20] sm:$0xff]
      %v497 = vld [vmem:[%s3 + $0x28] sm:$0xff]
      %v498 = vld [vmem:[%s3 + $0x30] sm:$0xff]
      %v499 = vld [vmem:[%s3 + $0x38] sm:$0xff]
      %v500 = vld [vmem:[%s3 + $0x40] sm:$0xff]
      %v501 = vld [vmem:[%s3 + $0x48] sm:$0xff]
      %v502 = vld [vmem:[%s3 + $0x50] sm:$0xff]
      %v503 = vld [vmem:[%s3 + $0x58] sm:$0xff]
      %v504 = vld [vmem:[%s3 + $0x60] sm:$0xff]
      %v505 = vld [vmem:[%s3 + $0x68] sm:$0xff]
      %v506 = vld [vmem:[%s3 + $0x70] sm:$0xff]
      %v507 = vld [vmem:[%s3 + $0x78] sm:$0xff]
      %508 = vmatpush.msra.mxu0 %v507
      %509 = vmatpush.msra.mxu0 %v506
      %510 = vmatpush.msra.mxu0 %v505
      %511 = vmatpush.msra.mxu0 %v504
      %512 = vmatpush.msra.mxu0 %v503
      %513 = vmatpush.msra.mxu0 %v502
      %514 = vmatpush.msra.mxu0 %v501
      %515 = vmatpush.msra.mxu0 %v500
      %516 = vmatpush.msra.mxu0 %v499
      %517 = vmatpush.msra.mxu0 %v498
      %518 = vmatpush.msra.mxu0 %v497
      %519 = vmatpush.msra.mxu0 %v496
      %520 = vmatpush.msra.mxu0 %v495
      %521 = vmatpush.msra.mxu0 %v494
      %522 = vmatpush.msra.mxu0 %v493
      %523 = vmatpush.msra.mxu0 %v492
      %524 = vmatmul.f32.gmra.mxu0 %v476
      %v525 = vpop.f32.mrf.mxu0
      %v526 = vadd.f32 %v409, %v525
      %527 = vmatmul.f32.gmra.mxu0 %v477
      %v528 = vpop.f32.mrf.mxu0
      %v529 = vadd.f32 %v412, %v528
      %530 = vmatmul.f32.gmra.mxu0 %v478
      %v531 = vpop.f32.mrf.mxu0
      %v532 = vadd.f32 %v415, %v531
      %533 = vmatmul.f32.gmra.mxu0 %v479
      %v534 = vpop.f32.mrf.mxu0
      %v535 = vadd.f32 %v418, %v534
      %536 = vmatmul.f32.gmra.mxu0 %v480
      %v537 = vpop.f32.mrf.mxu0
      %v538 = vadd.f32 %v421, %v537
      %539 = vmatmul.f32.gmra.mxu0 %v481
      %v540 = vpop.f32.mrf.mxu0
      %v541 = vadd.f32 %v424, %v540
      %542 = vmatmul.f32.gmra.mxu0 %v482
      %v543 = vpop.f32.mrf.mxu0
      %v544 = vadd.f32 %v427, %v543
      %545 = vmatmul.f32.gmra.mxu0 %v483
      %v546 = vpop.f32.mrf.mxu0
      %v547 = vadd.f32 %v430, %v546
      %548 = vmatmul.f32.gmra.mxu0 %v484
      %v549 = vpop.f32.mrf.mxu0
      %v550 = vadd.f32 %v433, %v549
      %551 = vmatmul.f32.gmra.mxu0 %v485
      %v552 = vpop.f32.mrf.mxu0
      %v553 = vadd.f32 %v436, %v552
      %554 = vmatmul.f32.gmra.mxu0 %v486
      %v555 = vpop.f32.mrf.mxu0
      %v556 = vadd.f32 %v439, %v555
      %557 = vmatmul.f32.gmra.mxu0 %v487
      %v558 = vpop.f32.mrf.mxu0
      %v559 = vadd.f32 %v442, %v558
      %560 = vmatmul.f32.gmra.mxu0 %v488
      %v561 = vpop.f32.mrf.mxu0
      %v562 = vadd.f32 %v445, %v561
      %563 = vmatmul.f32.gmra.mxu0 %v489
      %v564 = vpop.f32.mrf.mxu0
      %v565 = vadd.f32 %v448, %v564
      %566 = vmatmul.f32.gmra.mxu0 %v490
      %v567 = vpop.f32.mrf.mxu0
      %v568 = vadd.f32 %v451, %v567
      %569 = vmatmul.f32.gmra.mxu0 %v491
      %v570 = vpop.f32.mrf.mxu0
      %v571 = vadd.f32 %v454, %v570
      %572 = vdwg.mxu0
      %v573 = vld [vmem:[%s4] sm:$0x1]
      %v575 = vperm.slane %v573, 0
      %v577 = vadd.f32 %v526, %v575
      %v578 = vadd.f32 %v529, %v575
      %v579 = vadd.f32 %v532, %v575
      %v580 = vadd.f32 %v535, %v575
      %v581 = vadd.f32 %v538, %v575
      %v582 = vadd.f32 %v541, %v575
      %v583 = vadd.f32 %v544, %v575
      %v584 = vadd.f32 %v547, %v575
      %v585 = vadd.f32 %v550, %v575
      %v586 = vadd.f32 %v553, %v575
      %v587 = vadd.f32 %v556, %v575
      %v588 = vadd.f32 %v559, %v575
      %v589 = vadd.f32 %v562, %v575
      %v590 = vadd.f32 %v565, %v575
      %v591 = vadd.f32 %v568, %v575
      %v592 = vadd.f32 %v571, %v575
      %v593 = vmax.f32 %v577, 0.0
      %v594 = vmax.f32 %v578, 0.0
      %v595 = vmax.f32 %v579, 0.0
      %v596 = vmax.f32 %v580, 0.0
      %v597 = vmax.f32 %v581, 0.0
      %v598 = vmax.f32 %v582, 0.0
      %v599 = vmax.f32 %v583, 0.0
      %v600 = vmax.f32 %v584, 0.0
      %v601 = vmax.f32 %v585, 0.0
      %v602 = vmax.f32 %v586, 0.0
      %v603 = vmax.f32 %v587, 0.0
      %v604 = vmax.f32 %v588, 0.0
      %v605 = vmax.f32 %v589, 0.0
      %v606 = vmax.f32 %v590, 0.0
      %v607 = vmax.f32 %v591, 0.0
      %v608 = vmax.f32 %v592, 0.0
      %v609 = vld [vmem:[%s5] sm:$0x1]
      %v611 = vperm.slane %v609, 0
      %v613 = vmul.f32 %v593, %v611
      %v614 = vmul.f32 %v594, %v611
      %v615 = vmul.f32 %v595, %v611
      %v616 = vmul.f32 %v596, %v611
      %v617 = vmul.f32 %v597, %v611
      %v618 = vmul.f32 %v598, %v611
      %v619 = vmul.f32 %v599, %v611
      %v620 = vmul.f32 %v600, %v611
      %v621 = vmul.f32 %v601, %v611
      %v622 = vmul.f32 %v602, %v611
      %v623 = vmul.f32 %v603, %v611
      %v624 = vmul.f32 %v604, %v611
      %v625 = vmul.f32 %v605, %v611
      %v626 = vmul.f32 %v606, %v611
      %v627 = vmul.f32 %v607, %v611
      %v628 = vmul.f32 %v608, %v611
      %629 = vadd.xlane.f32.xlu0 %v613
      %v630 = vpop.xlane.xlu0 %629
      %631 = vadd.xlane.f32.xlu0 %v614
      %v632 = vpop.xlane.xlu0 %631
      %633 = vadd.xlane.f32.xlu0 %v615
      %v634 = vpop.xlane.xlu0 %633
      %635 = vadd.xlane.f32.xlu0 %v616
      %v636 = vpop.xlane.xlu0 %635
      %637 = vadd.xlane.f32.xlu0 %v617
      %v638 = vpop.xlane.xlu0 %637
      %639 = vadd.xlane.f32.xlu0 %v618
      %v640 = vpop.xlane.xlu0 %639
      %641 = vadd.xlane.f32.xlu0 %v619
      %v642 = vpop.xlane.xlu0 %641
      %643 = vadd.xlane.f32.xlu0 %v620
      %v644 = vpop.xlane.xlu0 %643
      %645 = vadd.xlane.f32.xlu0 %v621
      %v646 = vpop.xlane.xlu0 %645
      %647 = vadd.xlane.f32.xlu0 %v622
      %v648 = vpop.xlane.xlu0 %647
      %649 = vadd.xlane.f32.xlu0 %v623
      %v650 = vpop.xlane.xlu0 %649
      %651 = vadd.xlane.f32.xlu0 %v624
      %v652 = vpop.xlane.xlu0 %651
      %653 = vadd.xlane.f32.xlu0 %v625
      %v654 = vpop.xlane.xlu0 %653
      %655 = vadd.xlane.f32.xlu0 %v626
      %v656 = vpop.xlane.xlu0 %655
      %657 = vadd.xlane.f32.xlu0 %v627
      %v658 = vpop.xlane.xlu0 %657
      %659 = vadd.xlane.f32.xlu0 %v628
      %v660 = vpop.xlane.xlu0 %659
      %vm661 = vcmask 7168
      %662 = vst.msk [vmem:[%s253] sm:$0xff] %vm661, %v630
      %663 = vst.msk [vmem:[%s253 + $0x8] sm:$0xff] %vm661, %v632
      %664 = vst.msk [vmem:[%s253 + $0x10] sm:$0xff] %vm661, %v634
      %665 = vst.msk [vmem:[%s253 + $0x18] sm:$0xff] %vm661, %v636
      %666 = vst.msk [vmem:[%s253 + $0x20] sm:$0xff] %vm661, %v638
      %667 = vst.msk [vmem:[%s253 + $0x28] sm:$0xff] %vm661, %v640
      %668 = vst.msk [vmem:[%s253 + $0x30] sm:$0xff] %vm661, %v642
      %669 = vst.msk [vmem:[%s253 + $0x38] sm:$0xff] %vm661, %v644
      %670 = vst.msk [vmem:[%s253 + $0x40] sm:$0xff] %vm661, %v646
      %671 = vst.msk [vmem:[%s253 + $0x48] sm:$0xff] %vm661, %v648
      %672 = vst.msk [vmem:[%s253 + $0x50] sm:$0xff] %vm661, %v650
      %673 = vst.msk [vmem:[%s253 + $0x58] sm:$0xff] %vm661, %v652
      %674 = vst.msk [vmem:[%s253 + $0x60] sm:$0xff] %vm661, %v654
      %675 = vst.msk [vmem:[%s253 + $0x68] sm:$0xff] %vm661, %v656
      %676 = vst.msk [vmem:[%s253 + $0x70] sm:$0xff] %vm661, %v658
      %677 = vst.msk [vmem:[%s253 + $0x78] sm:$0xff] %vm661, %v660
      %s678 = smul.u32 16, %s17
      %p679 = scmp.lt.s32.totalorder %s678, 31
      %s680 = scalar_select %p679, %s678, 31
      %s681 = smul.addr %s680, 8
      %s682 = scalar_lea.vmem %s6, %s681
      // Predicated region
      $region45: #{tpu_custom_call.1} parent=43 // pred_check
        %p683 = pneg %p166
      $region46: #{tpu_custom_call.1} parent=43 // pred_check_branch
        %685 = sbr.rel (%p683) target = $region48
      $region47: #{tpu_custom_call.1} parent=43 // pred_region
        %s686 = smul.u32 16, %s17
      $region48: #{tpu_custom_call.1} parent=43 // pred_fallthru
        _
    $region44: #{tpu_custom_call.1} parent=5 // pred_fallthru
      _
    %p687 = scmp.le.s32.totalorder 2, %s12
    // Predicated region
    $region49: #{tpu_custom_call.1} parent=5 // pred_check
      %p688 = pneg %p687
    $region50: #{tpu_custom_call.1} parent=5 // pred_check_branch
      %690 = sbr.rel (%p688) target = $region52
    $region51: #{tpu_custom_call.1} parent=5 // pred_region
      %s691 = ssub.s32 %s12, 2
      // Predicated region
      $region53: #{tpu_custom_call.1} parent=51 // pred_check
        %p692 = pneg %p172
      $region54: #{tpu_custom_call.1} parent=51 // pred_check_branch
        %694 = sbr.rel (%p692) target = $region56
      $region55: #{tpu_custom_call.1} parent=51 // pred_region
        %s695 = smul.u32 16, %s18
        %p696 = scmp.lt.s32.totalorder %s695, 31
        %s697 = scalar_select %p696, %s695, 31
        %s698 = smul.addr %s697, 8
        %s699 = scalar_lea.vmem %s6, %s698
      $region56: #{tpu_custom_call.1} parent=51 // pred_fallthru
        _
    $region52: #{tpu_custom_call.1} parent=5 // pred_fallthru
      _
  $region6: #{tpu_custom_call.1} parent=0 // loop_footer
    %s16 = sadd.s32 1, %s12
  $region7: #{tpu_custom_call.1} parent=0 // loop_footer_branch
    %11 = sbr.rel target = $region3
  $region8: #{tpu_custom_call.1} parent=0 // loop_exit
    _

</llo_original>
